<compile_context>
chip_gen: v6e
topology: v6e:2x2x1
jax: 0.10.0
libtpu: 0.0.40
codegen_flags: <defaults>
</compile_context>

<pallas_src>
import jax
import jax.numpy as jnp
import numpy as np
from jax.experimental import pallas as pl
from jax.experimental.pallas import tpu as pltpu

EPS = 1e-12        # torch.nn.functional.normalize default eps
N_BRANCH = 4       # enc_joint, enc_joint_1, enc_joint_2, enc_joint_3


def _encode_l1norm_kernel(x_ref, w1_ref, b1_ref, w2_ref, b2_ref, o_ref):
    """All N_BRANCH encoder branches in one grid step:
       y_b = L1normalize(relu(x @ W1_b + b1_b) @ W2_b + b2_b, dim=1)."""
    x = x_ref[...]                                                    # (B, in_feat) bf16
    for br in range(N_BRANCH):                                        # static unroll
        h = jnp.dot(x, w1_ref[br], preferred_element_type=jnp.float32) + b1_ref[br]
        h = jnp.maximum(h, 0.0)                                       # ReLU (f32)
        y = (jnp.dot(h.astype(jnp.bfloat16), w2_ref[br],
                     preferred_element_type=jnp.float32) + b2_ref[br])  # (B, D) f32
        # F.normalize(y, p=1, dim=1): divide each row by max(sum(|y|), eps).
        denom = jnp.maximum(jnp.sum(jnp.abs(y), axis=1, keepdims=True), EPS)
        o_ref[br] = (y * pl.reciprocal(denom, approx=True)).astype(o_ref.dtype)


def encode_and_l1_normalize(x, w1_stack, b1_stack, w2_stack, b2_stack):
    """x: (B, in_feat) bf16 (backbone projection folded into W1);
       w1_stack: (n_branch, in_feat, D) bf16; w2_stack: (n_branch, D, D) bf16;
       biases: (n_branch, 1, D) f32.  Returns (n_branch, B, D) f32."""
    B, in_feat = x.shape
    n_branch, _, D = w1_stack.shape
    return pl.pallas_call(
        _encode_l1norm_kernel,
        out_shape=jax.ShapeDtypeStruct((n_branch, B, D), jnp.float32),
        grid_spec=pltpu.PrefetchScalarGridSpec(
            num_scalar_prefetch=0,
            grid=(1,),                                               # single step: all branches
            in_specs=[
                pl.BlockSpec((B, in_feat), lambda i: (0, 0)),            # x   (bf16)
                pl.BlockSpec((n_branch, in_feat, D), lambda i: (0, 0, 0)),  # W1  (bf16, [in,out])
                pl.BlockSpec((n_branch, 1, D), lambda i: (0, 0, 0)),        # b1  (f32)
                pl.BlockSpec((n_branch, D, D), lambda i: (0, 0, 0)),        # W2  (bf16, [in,out])
                pl.BlockSpec((n_branch, 1, D), lambda i: (0, 0, 0)),        # b2  (f32)
            ],
            out_specs=pl.BlockSpec((n_branch, B, D), lambda i: (0, 0, 0)),
        ),
        compiler_params=pltpu.CompilerParams(
            dimension_semantics=("arbitrary",)),
    )(x, w1_stack, b1_stack, w2_stack, b2_stack)


def _torch_linear_init(key, fan_in, shape):
    """PyTorch nn.Linear default init: U(-1/sqrt(fan_in), 1/sqrt(fan_in))."""
    bound = 1.0 / np.sqrt(fan_in)
    return jax.random.uniform(key, shape, jnp.float32, -bound, bound)


def _reference(x_bf16, w1_bf16, b1, w2_bf16, b2):
    """Pure-JAX reference of the same math with identical bf16 operand quantization."""
    x = x_bf16.astype(jnp.float32)
    w1 = w1_bf16.astype(jnp.float32)
    w2 = w2_bf16.astype(jnp.float32)
    h = jnp.maximum(jnp.einsum("bk,nkd->nbd", x, w1) + b1, 0.0)
    hq = h.astype(jnp.bfloat16).astype(jnp.float32)
    y = jnp.einsum("nbd,nde->nbe", hq, w2) + b2
    denom = jnp.maximum(jnp.sum(jnp.abs(y), axis=2, keepdims=True), EPS)
    return y / denom


if __name__ == "__main__":
    key = jax.random.PRNGKey(0)

    # Module hyper-params (small, consistent with opt.num_dim * opt.power)
    num_dim, power = 32, 4
    emb_dim = num_dim * power          # 128
    batch = 8
    in_feat = 64                       # raw molecule feature width fed to the stand-in backbone

    keys = jax.random.split(key, 32)
    input_molecule = jax.random.normal(keys[0], (batch, in_feat), jnp.float32)

    # --- stand-in molxlstm (linear): one projection per branch, folded into W1 below ---
    # branch order: [enc_joint(f_out), enc_joint_1(atom), enc_joint_2(fg), enc_joint_3(graph)]
    proj = jnp.stack([_torch_linear_init(keys[1 + i], in_feat, (in_feat, emb_dim))
                      for i in range(N_BRANCH)])                       # (4, in_feat, emb_dim)

    # --- ContrastiveEncode parameters for enc_joint, enc_joint_1, enc_joint_2, enc_joint_3 ---
    w1_f32 = jnp.stack([_torch_linear_init(keys[8 + i], emb_dim, (emb_dim, emb_dim)) for i in range(N_BRANCH)])
    b1 = jnp.stack([_torch_linear_init(keys[12 + i], emb_dim, (1, emb_dim)) for i in range(N_BRANCH)])
    w2_f32 = jnp.stack([_torch_linear_init(keys[16 + i], emb_dim, (emb_dim, emb_dim)) for i in range(N_BRANCH)])
    b2 = jnp.stack([_torch_linear_init(keys[20 + i], emb_dim, (1, emb_dim)) for i in range(N_BRANCH)])

    # Fold the linear backbone projection into W1 (f32 fold, then bf16 for the MXU path).
    w1_folded = jnp.einsum("nkd,nde->nke", proj, w1_f32)               # (4, in_feat, emb_dim)
    w1 = w1_folded.astype(jnp.bfloat16)
    w2 = w2_f32.astype(jnp.bfloat16)

    # bf16 activations into the kernel (halves activation DMA bytes, removes in-kernel cast).
    x_bf16 = input_molecule.astype(jnp.bfloat16)

    out = encode_and_l1_normalize(x_bf16, w1, b1, w2, b2)
    out = jax.block_until_ready(out)

    f_out_norm, atom_feat_norm, fg_feat_norm, graph_feat_norm = (
        out[0], out[1], out[2], out[3])

    # correctness check against a pure-JAX reference with the same bf16 quantization
    # (tolerance loosened vs f32: bf16 matmul operands + approx reciprocal)
    ref = _reference(x_bf16, w1, b1, w2, b2)
    np.testing.assert_allclose(np.asarray(out), np.asarray(ref), rtol=2e-2, atol=1e-4)

    print("KERNEL_OK")
</pallas_src>

<mosaic_0001>
module attributes {stable_mosaic.version = 11 : i64} {
  func.func @_encode_l1norm_kernel(%arg0: i32, %arg1: memref<8x64xbf16, #tpu.memory_space<vmem>>, %arg2: memref<4x64x128xbf16, #tpu.memory_space<vmem>>, %arg3: memref<4x1x128xf32, #tpu.memory_space<vmem>>, %arg4: memref<4x128x128xbf16, #tpu.memory_space<vmem>>, %arg5: memref<4x1x128xf32, #tpu.memory_space<vmem>>, %arg6: memref<4x8x128xf32, #tpu.memory_space<vmem>>) attributes {dimension_semantics = [#tpu.dimension_semantics<arbitrary>], iteration_bounds = array<i64: 1>, scalar_prefetch = 0 : i64, scratch_operands = 0 : i64, tpu.core_type = #tpu.core_type<tc>, window_params = [{pipeline_mode = #tpu.pipeline_mode<synchronous>, transform_indices = @transform_0, window_bounds = array<i64: 8, 64>}, {pipeline_mode = #tpu.pipeline_mode<synchronous>, transform_indices = @transform_1, window_bounds = array<i64: 4, 64, 128>}, {pipeline_mode = #tpu.pipeline_mode<synchronous>, transform_indices = @transform_2, window_bounds = array<i64: 4, 1, 128>}, {pipeline_mode = #tpu.pipeline_mode<synchronous>, transform_indices = @transform_3, window_bounds = array<i64: 4, 128, 128>}, {pipeline_mode = #tpu.pipeline_mode<synchronous>, transform_indices = @transform_4, window_bounds = array<i64: 4, 1, 128>}, {pipeline_mode = #tpu.pipeline_mode<synchronous>, transform_indices = @transform_5, window_bounds = array<i64: 4, 8, 128>}]} {
    %c0 = arith.constant 0 : index
    %c0_0 = arith.constant 0 : index
    %0 = vector.load %arg1[%c0, %c0_0] : memref<8x64xbf16, #tpu.memory_space<vmem>>, vector<8x64xbf16>
    %c0_1 = arith.constant 0 : index
    %c0_2 = arith.constant 0 : index
    %c0_3 = arith.constant 0 : index
    %1 = vector.load %arg2[%c0_1, %c0_2, %c0_3] : memref<4x64x128xbf16, #tpu.memory_space<vmem>>, vector<1x64x128xbf16>
    %2 = vector.shape_cast %1 : vector<1x64x128xbf16> to vector<64x128xbf16>
    %cst = arith.constant dense<0.000000e+00> : vector<8x128xf32>
    %3 = tpu.matmul %0, %2, %cst {dimension_numbers = #tpu.dot_dimension_numbers<[1], [0], [0], [1], [0, 0, 1, 1], [], []>} : vector<8x64xbf16>, vector<64x128xbf16>, vector<8x128xf32> -> vector<8x128xf32>
    %c0_4 = arith.constant 0 : index
    %c0_5 = arith.constant 0 : index
    %c0_6 = arith.constant 0 : index
    %4 = vector.load %arg3[%c0_4, %c0_5, %c0_6] : memref<4x1x128xf32, #tpu.memory_space<vmem>>, vector<1x1x128xf32>
    %5 = vector.shape_cast %4 : vector<1x1x128xf32> to vector<1x128xf32>
    %6 = vector.broadcast %5 : vector<1x128xf32> to vector<8x128xf32>
    %7 = arith.addf %3, %6 : vector<8x128xf32>
    %cst_7 = arith.constant 0.000000e+00 : f32
    %8 = vector.broadcast %cst_7 : f32 to vector<8x128xf32>
    %9 = arith.maximumf %7, %8 : vector<8x128xf32>
    %10 = arith.truncf %9 : vector<8x128xf32> to vector<8x128xbf16>
    %c0_8 = arith.constant 0 : index
    %c0_9 = arith.constant 0 : index
    %c0_10 = arith.constant 0 : index
    %11 = vector.load %arg4[%c0_8, %c0_9, %c0_10] : memref<4x128x128xbf16, #tpu.memory_space<vmem>>, vector<1x128x128xbf16>
    %12 = vector.shape_cast %11 : vector<1x128x128xbf16> to vector<128x128xbf16>
    %cst_11 = arith.constant dense<0.000000e+00> : vector<8x128xf32>
    %13 = tpu.matmul %10, %12, %cst_11 {dimension_numbers = #tpu.dot_dimension_numbers<[1], [0], [0], [1], [0, 0, 1, 1], [], []>} : vector<8x128xbf16>, vector<128x128xbf16>, vector<8x128xf32> -> vector<8x128xf32>
    %c0_12 = arith.constant 0 : index
    %c0_13 = arith.constant 0 : index
    %c0_14 = arith.constant 0 : index
    %14 = vector.load %arg5[%c0_12, %c0_13, %c0_14] : memref<4x1x128xf32, #tpu.memory_space<vmem>>, vector<1x1x128xf32>
    %15 = vector.shape_cast %14 : vector<1x1x128xf32> to vector<1x128xf32>
    %16 = vector.broadcast %15 : vector<1x128xf32> to vector<8x128xf32>
    %17 = arith.addf %13, %16 : vector<8x128xf32>
    %18 = math.absf %17 : vector<8x128xf32>
    %cst_15 = arith.constant dense<0.000000e+00> : vector<8xf32>
    %19 = vector.multi_reduction <add>, %18, %cst_15 [1] : vector<8x128xf32> to vector<8xf32>
    %20 = vector.shape_cast %19 : vector<8xf32> to vector<8x1xf32>
    %cst_16 = arith.constant 9.99999996E-13 : f32
    %21 = vector.broadcast %cst_16 : f32 to vector<8x1xf32>
    %22 = arith.maximumf %20, %21 : vector<8x1xf32>
    %23 = tpu.reciprocal %22 {approx = true} : vector<8x1xf32> -> vector<8x1xf32>
    %24 = vector.broadcast %23 : vector<8x1xf32> to vector<8x128xf32>
    %25 = arith.mulf %17, %24 : vector<8x128xf32>
    %c0_17 = arith.constant 0 : index
    %c0_18 = arith.constant 0 : index
    %c0_19 = arith.constant 0 : index
    %26 = vector.load %arg6[%c0_17, %c0_18, %c0_19] : memref<4x8x128xf32, #tpu.memory_space<vmem>>, vector<1x8x128xf32>
    %27 = vector.shape_cast %26 : vector<1x8x128xf32> to vector<8x128xf32>
    %28 = vector.shape_cast %25 : vector<8x128xf32> to vector<1x8x128xf32>
    tpu.vector_store %arg6[%c0_17, %c0_18, %c0_19], %28 {strides = array<i32>} : memref<4x8x128xf32, #tpu.memory_space<vmem>>, vector<1x8x128xf32>,
    %c1 = arith.constant 1 : index
    %c0_20 = arith.constant 0 : index
    %c0_21 = arith.constant 0 : index
    %29 = vector.load %arg2[%c1, %c0_20, %c0_21] : memref<4x64x128xbf16, #tpu.memory_space<vmem>>, vector<1x64x128xbf16>
    %30 = vector.shape_cast %29 : vector<1x64x128xbf16> to vector<64x128xbf16>
    %cst_22 = arith.constant dense<0.000000e+00> : vector<8x128xf32>
    %31 = tpu.matmul %0, %30, %cst_22 {dimension_numbers = #tpu.dot_dimension_numbers<[1], [0], [0], [1], [0, 0, 1, 1], [], []>} : vector<8x64xbf16>, vector<64x128xbf16>, vector<8x128xf32> -> vector<8x128xf32>
    %c1_23 = arith.constant 1 : index
    %c0_24 = arith.constant 0 : index
    %c0_25 = arith.constant 0 : index
    %32 = vector.load %arg3[%c1_23, %c0_24, %c0_25] : memref<4x1x128xf32, #tpu.memory_space<vmem>>, vector<1x1x128xf32>
    %33 = vector.shape_cast %32 : vector<1x1x128xf32> to vector<1x128xf32>
    %34 = vector.broadcast %33 : vector<1x128xf32> to vector<8x128xf32>
    %35 = arith.addf %31, %34 : vector<8x128xf32>
    %cst_26 = arith.constant 0.000000e+00 : f32
    %36 = vector.broadcast %cst_26 : f32 to vector<8x128xf32>
    %37 = arith.maximumf %35, %36 : vector<8x128xf32>
    %38 = arith.truncf %37 : vector<8x128xf32> to vector<8x128xbf16>
    %c1_27 = arith.constant 1 : index
    %c0_28 = arith.constant 0 : index
    %c0_29 = arith.constant 0 : index
    %39 = vector.load %arg4[%c1_27, %c0_28, %c0_29] : memref<4x128x128xbf16, #tpu.memory_space<vmem>>, vector<1x128x128xbf16>
    %40 = vector.shape_cast %39 : vector<1x128x128xbf16> to vector<128x128xbf16>
    %cst_30 = arith.constant dense<0.000000e+00> : vector<8x128xf32>
    %41 = tpu.matmul %38, %40, %cst_30 {dimension_numbers = #tpu.dot_dimension_numbers<[1], [0], [0], [1], [0, 0, 1, 1], [], []>} : vector<8x128xbf16>, vector<128x128xbf16>, vector<8x128xf32> -> vector<8x128xf32>
    %c1_31 = arith.constant 1 : index
    %c0_32 = arith.constant 0 : index
    %c0_33 = arith.constant 0 : index
    %42 = vector.load %arg5[%c1_31, %c0_32, %c0_33] : memref<4x1x128xf32, #tpu.memory_space<vmem>>, vector<1x1x128xf32>
    %43 = vector.shape_cast %42 : vector<1x1x128xf32> to vector<1x128xf32>
    %44 = vector.broadcast %43 : vector<1x128xf32> to vector<8x128xf32>
    %45 = arith.addf %41, %44 : vector<8x128xf32>
    %46 = math.absf %45 : vector<8x128xf32>
    %cst_34 = arith.constant dense<0.000000e+00> : vector<8xf32>
    %47 = vector.multi_reduction <add>, %46, %cst_34 [1] : vector<8x128xf32> to vector<8xf32>
    %48 = vector.shape_cast %47 : vector<8xf32> to vector<8x1xf32>
    %cst_35 = arith.constant 9.99999996E-13 : f32
    %49 = vector.broadcast %cst_35 : f32 to vector<8x1xf32>
    %50 = arith.maximumf %48, %49 : vector<8x1xf32>
    %51 = tpu.reciprocal %50 {approx = true} : vector<8x1xf32> -> vector<8x1xf32>
    %52 = vector.broadcast %51 : vector<8x1xf32> to vector<8x128xf32>
    %53 = arith.mulf %45, %52 : vector<8x128xf32>
    %c1_36 = arith.constant 1 : index
    %c0_37 = arith.constant 0 : index
    %c0_38 = arith.constant 0 : index
    %54 = vector.load %arg6[%c1_36, %c0_37, %c0_38] : memref<4x8x128xf32, #tpu.memory_space<vmem>>, vector<1x8x128xf32>
    %55 = vector.shape_cast %54 : vector<1x8x128xf32> to vector<8x128xf32>
    %56 = vector.shape_cast %53 : vector<8x128xf32> to vector<1x8x128xf32>
    tpu.vector_store %arg6[%c1_36, %c0_37, %c0_38], %56 {strides = array<i32>} : memref<4x8x128xf32, #tpu.memory_space<vmem>>, vector<1x8x128xf32>,
    %c2 = arith.constant 2 : index
    %c0_39 = arith.constant 0 : index
    %c0_40 = arith.constant 0 : index
    %57 = vector.load %arg2[%c2, %c0_39, %c0_40] : memref<4x64x128xbf16, #tpu.memory_space<vmem>>, vector<1x64x128xbf16>
    %58 = vector.shape_cast %57 : vector<1x64x128xbf16> to vector<64x128xbf16>
    %cst_41 = arith.constant dense<0.000000e+00> : vector<8x128xf32>
    %59 = tpu.matmul %0, %58, %cst_41 {dimension_numbers = #tpu.dot_dimension_numbers<[1], [0], [0], [1], [0, 0, 1, 1], [], []>} : vector<8x64xbf16>, vector<64x128xbf16>, vector<8x128xf32> -> vector<8x128xf32>
    %c2_42 = arith.constant 2 : index
    %c0_43 = arith.constant 0 : index
    %c0_44 = arith.constant 0 : index
    %60 = vector.load %arg3[%c2_42, %c0_43, %c0_44] : memref<4x1x128xf32, #tpu.memory_space<vmem>>, vector<1x1x128xf32>
    %61 = vector.shape_cast %60 : vector<1x1x128xf32> to vector<1x128xf32>
    %62 = vector.broadcast %61 : vector<1x128xf32> to vector<8x128xf32>
    %63 = arith.addf %59, %62 : vector<8x128xf32>
    %cst_45 = arith.constant 0.000000e+00 : f32
    %64 = vector.broadcast %cst_45 : f32 to vector<8x128xf32>
    %65 = arith.maximumf %63, %64 : vector<8x128xf32>
    %66 = arith.truncf %65 : vector<8x128xf32> to vector<8x128xbf16>
    %c2_46 = arith.constant 2 : index
    %c0_47 = arith.constant 0 : index
    %c0_48 = arith.constant 0 : index
    %67 = vector.load %arg4[%c2_46, %c0_47, %c0_48] : memref<4x128x128xbf16, #tpu.memory_space<vmem>>, vector<1x128x128xbf16>
    %68 = vector.shape_cast %67 : vector<1x128x128xbf16> to vector<128x128xbf16>
    %cst_49 = arith.constant dense<0.000000e+00> : vector<8x128xf32>
    %69 = tpu.matmul %66, %68, %cst_49 {dimension_numbers = #tpu.dot_dimension_numbers<[1], [0], [0], [1], [0, 0, 1, 1], [], []>} : vector<8x128xbf16>, vector<128x128xbf16>, vector<8x128xf32> -> vector<8x128xf32>
    %c2_50 = arith.constant 2 : index
    %c0_51 = arith.constant 0 : index
    %c0_52 = arith.constant 0 : index
    %70 = vector.load %arg5[%c2_50, %c0_51, %c0_52] : memref<4x1x128xf32, #tpu.memory_space<vmem>>, vector<1x1x128xf32>
    %71 = vector.shape_cast %70 : vector<1x1x128xf32> to vector<1x128xf32>
    %72 = vector.broadcast %71 : vector<1x128xf32> to vector<8x128xf32>
    %73 = arith.addf %69, %72 : vector<8x128xf32>
    %74 = math.absf %73 : vector<8x128xf32>
    %cst_53 = arith.constant dense<0.000000e+00> : vector<8xf32>
    %75 = vector.multi_reduction <add>, %74, %cst_53 [1] : vector<8x128xf32> to vector<8xf32>
    %76 = vector.shape_cast %75 : vector<8xf32> to vector<8x1xf32>
    %cst_54 = arith.constant 9.99999996E-13 : f32
    %77 = vector.broadcast %cst_54 : f32 to vector<8x1xf32>
    %78 = arith.maximumf %76, %77 : vector<8x1xf32>
    %79 = tpu.reciprocal %78 {approx = true} : vector<8x1xf32> -> vector<8x1xf32>
    %80 = vector.broadcast %79 : vector<8x1xf32> to vector<8x128xf32>
    %81 = arith.mulf %73, %80 : vector<8x128xf32>
    %c2_55 = arith.constant 2 : index
    %c0_56 = arith.constant 0 : index
    %c0_57 = arith.constant 0 : index
    %82 = vector.load %arg6[%c2_55, %c0_56, %c0_57] : memref<4x8x128xf32, #tpu.memory_space<vmem>>, vector<1x8x128xf32>
    %83 = vector.shape_cast %82 : vector<1x8x128xf32> to vector<8x128xf32>
    %84 = vector.shape_cast %81 : vector<8x128xf32> to vector<1x8x128xf32>
    tpu.vector_store %arg6[%c2_55, %c0_56, %c0_57], %84 {strides = array<i32>} : memref<4x8x128xf32, #tpu.memory_space<vmem>>, vector<1x8x128xf32>,
    %c3 = arith.constant 3 : index
    %c0_58 = arith.constant 0 : index
    %c0_59 = arith.constant 0 : index
    %85 = vector.load %arg2[%c3, %c0_58, %c0_59] : memref<4x64x128xbf16, #tpu.memory_space<vmem>>, vector<1x64x128xbf16>
    %86 = vector.shape_cast %85 : vector<1x64x128xbf16> to vector<64x128xbf16>
    %cst_60 = arith.constant dense<0.000000e+00> : vector<8x128xf32>
    %87 = tpu.matmul %0, %86, %cst_60 {dimension_numbers = #tpu.dot_dimension_numbers<[1], [0], [0], [1], [0, 0, 1, 1], [], []>} : vector<8x64xbf16>, vector<64x128xbf16>, vector<8x128xf32> -> vector<8x128xf32>
    %c3_61 = arith.constant 3 : index
    %c0_62 = arith.constant 0 : index
    %c0_63 = arith.constant 0 : index
    %88 = vector.load %arg3[%c3_61, %c0_62, %c0_63] : memref<4x1x128xf32, #tpu.memory_space<vmem>>, vector<1x1x128xf32>
    %89 = vector.shape_cast %88 : vector<1x1x128xf32> to vector<1x128xf32>
    %90 = vector.broadcast %89 : vector<1x128xf32> to vector<8x128xf32>
    %91 = arith.addf %87, %90 : vector<8x128xf32>
    %cst_64 = arith.constant 0.000000e+00 : f32
    %92 = vector.broadcast %cst_64 : f32 to vector<8x128xf32>
    %93 = arith.maximumf %91, %92 : vector<8x128xf32>
    %94 = arith.truncf %93 : vector<8x128xf32> to vector<8x128xbf16>
    %c3_65 = arith.constant 3 : index
    %c0_66 = arith.constant 0 : index
    %c0_67 = arith.constant 0 : index
    %95 = vector.load %arg4[%c3_65, %c0_66, %c0_67] : memref<4x128x128xbf16, #tpu.memory_space<vmem>>, vector<1x128x128xbf16>
    %96 = vector.shape_cast %95 : vector<1x128x128xbf16> to vector<128x128xbf16>
    %cst_68 = arith.constant dense<0.000000e+00> : vector<8x128xf32>
    %97 = tpu.matmul %94, %96, %cst_68 {dimension_numbers = #tpu.dot_dimension_numbers<[1], [0], [0], [1], [0, 0, 1, 1], [], []>} : vector<8x128xbf16>, vector<128x128xbf16>, vector<8x128xf32> -> vector<8x128xf32>
    %c3_69 = arith.constant 3 : index
    %c0_70 = arith.constant 0 : index
    %c0_71 = arith.constant 0 : index
    %98 = vector.load %arg5[%c3_69, %c0_70, %c0_71] : memref<4x1x128xf32, #tpu.memory_space<vmem>>, vector<1x1x128xf32>
    %99 = vector.shape_cast %98 : vector<1x1x128xf32> to vector<1x128xf32>
    %100 = vector.broadcast %99 : vector<1x128xf32> to vector<8x128xf32>
    %101 = arith.addf %97, %100 : vector<8x128xf32>
    %102 = math.absf %101 : vector<8x128xf32>
    %cst_72 = arith.constant dense<0.000000e+00> : vector<8xf32>
    %103 = vector.multi_reduction <add>, %102, %cst_72 [1] : vector<8x128xf32> to vector<8xf32>
    %104 = vector.shape_cast %103 : vector<8xf32> to vector<8x1xf32>
    %cst_73 = arith.constant 9.99999996E-13 : f32
    %105 = vector.broadcast %cst_73 : f32 to vector<8x1xf32>
    %106 = arith.maximumf %104, %105 : vector<8x1xf32>
    %107 = tpu.reciprocal %106 {approx = true} : vector<8x1xf32> -> vector<8x1xf32>
    %108 = vector.broadcast %107 : vector<8x1xf32> to vector<8x128xf32>
    %109 = arith.mulf %101, %108 : vector<8x128xf32>
    %c3_74 = arith.constant 3 : index
    %c0_75 = arith.constant 0 : index
    %c0_76 = arith.constant 0 : index
    %110 = vector.load %arg6[%c3_74, %c0_75, %c0_76] : memref<4x8x128xf32, #tpu.memory_space<vmem>>, vector<1x8x128xf32>
    %111 = vector.shape_cast %110 : vector<1x8x128xf32> to vector<8x128xf32>
    %112 = vector.shape_cast %109 : vector<8x128xf32> to vector<1x8x128xf32>
    tpu.vector_store %arg6[%c3_74, %c0_75, %c0_76], %112 {strides = array<i32>} : memref<4x8x128xf32, #tpu.memory_space<vmem>>, vector<1x8x128xf32>,
    return
  }
  func.func @transform_0(%arg0: i32) -> (i32, i32) {
    %c0_i32 = arith.constant 0 : i32
    %c0_i32_0 = arith.constant 0 : i32
    %c0_i32_1 = arith.constant 0 : i32
    return %c0_i32, %c0_i32_0 : i32, i32
  }
  func.func @transform_1(%arg0: i32) -> (i32, i32, i32) {
    %c0_i32 = arith.constant 0 : i32
    %c0_i32_0 = arith.constant 0 : i32
    %c0_i32_1 = arith.constant 0 : i32
    %c0_i32_2 = arith.constant 0 : i32
    return %c0_i32, %c0_i32_0, %c0_i32_1 : i32, i32, i32
  }
  func.func @transform_2(%arg0: i32) -> (i32, i32, i32) {
    %c0_i32 = arith.constant 0 : i32
    %c0_i32_0 = arith.constant 0 : i32
    %c0_i32_1 = arith.constant 0 : i32
    %c0_i32_2 = arith.constant 0 : i32
    return %c0_i32, %c0_i32_0, %c0_i32_1 : i32, i32, i32
  }
  func.func @transform_3(%arg0: i32) -> (i32, i32, i32) {
    %c0_i32 = arith.constant 0 : i32
    %c0_i32_0 = arith.constant 0 : i32
    %c0_i32_1 = arith.constant 0 : i32
    %c0_i32_2 = arith.constant 0 : i32
    return %c0_i32, %c0_i32_0, %c0_i32_1 : i32, i32, i32
  }
  func.func @transform_4(%arg0: i32) -> (i32, i32, i32) {
    %c0_i32 = arith.constant 0 : i32
    %c0_i32_0 = arith.constant 0 : i32
    %c0_i32_1 = arith.constant 0 : i32
    %c0_i32_2 = arith.constant 0 : i32
    return %c0_i32, %c0_i32_0, %c0_i32_1 : i32, i32, i32
  }
  func.func @transform_5(%arg0: i32) -> (i32, i32, i32) {
    %c0_i32 = arith.constant 0 : i32
    %c0_i32_0 = arith.constant 0 : i32
    %c0_i32_1 = arith.constant 0 : i32
    %c0_i32_2 = arith.constant 0 : i32
    return %c0_i32, %c0_i32_0, %c0_i32_1 : i32, i32, i32
  }
}

</mosaic_0001>

<llo_original>
// kernel: tpu_custom_call.1
$region0: #{tpu_custom_call.1}
  #allocation0 [shape = 'u32[]', space=smem, size = 0x4, offset = 0x4, fixed_abs, tag = 'smem constant byte address 0x4 - core index']
  #allocation1 [shape = 'u32[144,128]{1,0:T(1,128)}', space=vmem, size = 0x12000, scoped, tag = 'internal scratch']
  %s0 = inlined_call_operand.hbm [shape: bf16[8,64], index: 0, kind: input, shape index: {}]
  %s1 = inlined_call_operand.hbm [shape: bf16[4,64,128], index: 1, kind: input, shape index: {}]
  %s2 = inlined_call_operand.hbm [shape: f32[4,1,128], index: 2, kind: input, shape index: {}]
  %s3 = inlined_call_operand.hbm [shape: bf16[4,128,128], index: 3, kind: input, shape index: {}]
  %s4 = inlined_call_operand.vmem [shape: f32[4,1,128], index: 4, kind: input, shape index: {}]
  %s5 = inlined_call_operand.hbm [shape: f32[4,8,128], index: 5, kind: output, shape index: {}]
  %s6 = sld [smem:[#allocation0]]
  $region46: #{tpu_custom_call.1} parent=0
    _
  %s8 = ssub.s32 1, %s6
  %s9 = scalar_select 0, %s8, %s6
  $region1: #{tpu_custom_call.1} parent=0
    #allocation2 [shape = 'u8[2048]{0}', space=vmem, size = 0x800, scoped, tag = 'input window, operand 0, single buffered']
    #allocation3 [shape = 's32[1]{0}', space=sflag, size = 0x4, scoped, tag = 'scoped memory for tpu_custom_call.1']
    #allocation4 [shape = 's32[1]{0}', space=sflag, size = 0x4, scoped, tag = 'scoped memory for tpu_custom_call.1']
    #allocation5 [shape = 'u8[65536]{0}', space=vmem, size = 0x10000, scoped, tag = 'input window, operand 1, single buffered']
    #allocation6 [shape = 's32[1]{0}', space=sflag, size = 0x4, scoped, tag = 'scoped memory for tpu_custom_call.1']
    #allocation7 [shape = 'u8[2048]{0}', space=vmem, size = 0x800, scoped, tag = 'input window, operand 2, single buffered']
    #allocation8 [shape = 'u8[131072]{0}', space=vmem, size = 0x20000, scoped, tag = 'input window, operand 3, single buffered']
    #allocation9 [shape = 's32[1]{0}', space=sflag, size = 0x4, scoped, tag = 'scoped memory for tpu_custom_call.1']
    #allocation10 [shape = 'u8[16384]{0}', space=vmem, size = 0x4000, scoped, tag = 'output window, operand 0, single buffered']
    %10 = vsyncpa [#allocation3], 0
    %11 = vsyncpa [#allocation6], 0
    %12 = vsyncpa [#allocation9], 0
    %13 = vsyncpa [#allocation4], 0
    // Predicated region
    $region2: #{tpu_custom_call.1} parent=1 // pred_check
      _
    $region3: #{tpu_custom_call.1} parent=1 // pred_check_branch
      %15 = sbr.rel (0) target = $region5
    $region4: #{tpu_custom_call.1} parent=1 // pred_region
      %s17 = ssub.s32 64, 64
      %18 = vsyncadd [#allocation3], %s17
      %s20 = sshll.u32 [#allocation2], 4
      %s21 = int_to_ptr.vmem [resolvable:$true] %s20
      %23 = dma.hbm_to_vmem [thread:$0]  %s0, 64, %s21, [#allocation3]
    $region5: #{tpu_custom_call.1} parent=1 // pred_fallthru
      _
    // Predicated region
    $region6: #{tpu_custom_call.1} parent=1 // pred_check
      _
    $region7: #{tpu_custom_call.1} parent=1 // pred_check_branch
      %25 = sbr.rel (0) target = $region9
    $region8: #{tpu_custom_call.1} parent=1 // pred_region
      %s27 = ssub.s32 2048, 2048
      %28 = vsyncadd [#allocation6], %s27
      %s29 = sshll.u32 [#allocation5], 4
      %s30 = int_to_ptr.vmem [resolvable:$true] %s29
      %35 = dma.hbm_to_vmem [thread:$0]  %s1, 2048, %s30, [#allocation6], 64, 64, 4
    $region9: #{tpu_custom_call.1} parent=1 // pred_fallthru
      _
    // Predicated region
    $region10: #{tpu_custom_call.1} parent=1 // pred_check
      _
    $region11: #{tpu_custom_call.1} parent=1 // pred_check_branch
      %37 = sbr.rel (0) target = $region13
    $region12: #{tpu_custom_call.1} parent=1 // pred_region
      %s39 = ssub.s32 64, 64
      %40 = vsyncadd [#allocation6], %s39
      %s41 = sshll.u32 [#allocation7], 4
      %s42 = int_to_ptr.vmem [resolvable:$true] %s41
      %47 = dma.hbm_to_vmem [thread:$0]  %s2, 64, %s42, [#allocation6], 16, 16, 1
    $region13: #{tpu_custom_call.1} parent=1 // pred_fallthru
      _
    // Predicated region
    $region14: #{tpu_custom_call.1} parent=1 // pred_check
      _
    $region15: #{tpu_custom_call.1} parent=1 // pred_check_branch
      %49 = sbr.rel (0) target = $region17
    $region16: #{tpu_custom_call.1} parent=1 // pred_region
      %s51 = ssub.s32 4096, 4096
      %52 = vsyncadd [#allocation9], %s51
      %s53 = sshll.u32 [#allocation8], 4
      %s54 = int_to_ptr.vmem [resolvable:$true] %s53
      %59 = dma.hbm_to_vmem [thread:$0]  %s3, 4096, %s54, [#allocation9], 64, 64, 4
    $region17: #{tpu_custom_call.1} parent=1 // pred_fallthru
      _
    // Predicated region
    $region18: #{tpu_custom_call.1} parent=1 // pred_check
      _
    $region19: #{tpu_custom_call.1} parent=1 // pred_check_branch
      %61 = sbr.rel (0) target = $region21
    $region20: #{tpu_custom_call.1} parent=1 // pred_region
      _
    $region21: #{tpu_custom_call.1} parent=1 // pred_fallthru
      _
    // Predicated region
    $region22: #{tpu_custom_call.1} parent=1 // pred_check
      _
    $region23: #{tpu_custom_call.1} parent=1 // pred_check_branch
      %63 = sbr.rel (0) target = $region25
    $region24: #{tpu_custom_call.1} parent=1 // pred_region
      %64 = dma.done [#allocation3], 64
    $region25: #{tpu_custom_call.1} parent=1 // pred_fallthru
      _
    // Predicated region
    $region26: #{tpu_custom_call.1} parent=1 // pred_check
      _
    $region27: #{tpu_custom_call.1} parent=1 // pred_check_branch
      %66 = sbr.rel (0) target = $region29
    $region28: #{tpu_custom_call.1} parent=1 // pred_region
      %67 = dma.done [#allocation6], 2048
    $region29: #{tpu_custom_call.1} parent=1 // pred_fallthru
      _
    // Predicated region
    $region30: #{tpu_custom_call.1} parent=1 // pred_check
      _
    $region31: #{tpu_custom_call.1} parent=1 // pred_check_branch
      %69 = sbr.rel (0) target = $region33
    $region32: #{tpu_custom_call.1} parent=1 // pred_region
      %70 = dma.done [#allocation6], 64
    $region33: #{tpu_custom_call.1} parent=1 // pred_fallthru
      _
    // Predicated region
    $region34: #{tpu_custom_call.1} parent=1 // pred_check
      _
    $region35: #{tpu_custom_call.1} parent=1 // pred_check_branch
      %72 = sbr.rel (0) target = $region37
    $region36: #{tpu_custom_call.1} parent=1 // pred_region
      %73 = dma.done [#allocation9], 4096
    $region37: #{tpu_custom_call.1} parent=1 // pred_fallthru
      _
    %v75 = vld [vmem:[#allocation2] sm:$0xf]
    %v76 = vld [vmem:[#allocation5] sm:$0xf]
    %v77 = vld [vmem:[#allocation5 + $0x4] sm:$0xf]
    %v78 = vld [vmem:[#allocation5 + $0x8] sm:$0xf]
    %v79 = vld [vmem:[#allocation5 + $0xc] sm:$0xf]
    %v80 = vld [vmem:[#allocation5 + $0x10] sm:$0xf]
    %v81 = vld [vmem:[#allocation5 + $0x14] sm:$0xf]
    %v82 = vld [vmem:[#allocation5 + $0x18] sm:$0xf]
    %v83 = vld [vmem:[#allocation5 + $0x1c] sm:$0xf]
    %v84 = vld [vmem:[#allocation7] sm:$0x1]
    %v86 = vlaneseq
    %v87 = vshrl.u32 %v86, 7
    %v88 = vsub.s32 0, %v87
    %v89 = vrot.slane %v84, %v88
    %v99 = vunpack.c.l.b16 %v76
    %v100 = vunpack.c.l.b16 %v77
    %v101 = vunpack.c.l.b16 %v78
    %v102 = vunpack.c.l.b16 %v79
    %v103 = vunpack.c.l.b16 %v80
    %v104 = vunpack.c.l.b16 %v81
    %v105 = vunpack.c.l.b16 %v82
    %v106 = vunpack.c.l.b16 %v83
    %v107 = vpack.c.b16 %v100, %v99
    %v108 = vpack.c.b16 %v102, %v101
    %v109 = vpack.c.b16 %v104, %v103
    %v110 = vpack.c.b16 %v106, %v105
    %vm115 = vcmask 523264
    %v117 = vsel %vm115, %v75, 0
    %119 = vmatprep.subr.bf16.mxu0 0
    %120 = vmatpush1.bf16.msra.mxu0 0
    %121 = vmatprep.subr.bf16.mxu0 0
    %122 = vmatpush1.bf16.msra.mxu0 0
    %123 = vmatprep.subr.bf16.mxu0 0
    %124 = vmatpush1.bf16.msra.mxu0 0
    %125 = vmatprep.subr.bf16.mxu0 0
    %126 = vmatpush1.bf16.msra.mxu0 0
    %127 = vmatprep.subr.bf16.mxu0 0
    %128 = vmatpush1.bf16.msra.mxu0 %v110
    %129 = vmatprep.subr.bf16.mxu0 0
    %130 = vmatpush1.bf16.msra.mxu0 %v109
    %131 = vmatprep.subr.bf16.mxu0 0
    %132 = vmatpush1.bf16.msra.mxu0 %v108
    %133 = vmatprep.subr.bf16.mxu0 0
    %134 = vmatpush1.bf16.msra.mxu0 %v107
    %135 = vmatprep.subr.bf16.mxu0 0
    %136 = vmatpush2.bf16.msra.mxu0 0
    %137 = vmatprep.subr.bf16.mxu0 0
    %138 = vmatpush2.bf16.msra.mxu0 0
    %139 = vmatprep.subr.bf16.mxu0 0
    %140 = vmatpush2.bf16.msra.mxu0 0
    %141 = vmatprep.subr.bf16.mxu0 0
    %142 = vmatpush2.bf16.msra.mxu0 0
    %143 = vmatprep.subr.bf16.mxu0 0
    %144 = vmatpush2.bf16.msra.mxu0 0
    %145 = vmatprep.subr.bf16.mxu0 0
    %146 = vmatpush2.bf16.msra.mxu0 0
    %147 = vmatprep.subr.bf16.mxu0 0
    %148 = vmatpush2.bf16.msra.mxu0 0
    %149 = vmatprep.subr.bf16.mxu0 0
    %150 = vmatpush2.bf16.msra.mxu0 0
    %151 = vmatprep.mubr.bf16.mxu0 0
    %152 = vmatmul.mubr.bf16.gmra.mxu0 %v117
    %v153 = vpop.f32.mrf.mxu0
    %v154 = vadd.f32 %v89, %v153
    %v155 = vpop.f32.mrf.mxu0
    %v156 = vpop.f32.mrf.mxu0
    %v157 = vpop.f32.mrf.mxu0
    %158 = vdwg.mxu0
    %v159 = vmax.f32 %v154, 0.0
    %v160 = vpack.c.bf16 %v159, %v159
    %v161 = vld [vmem:[#allocation8] sm:$0xf]
    %v162 = vld [vmem:[#allocation8 + $0x4] sm:$0xf]
    %v163 = vld [vmem:[#allocation8 + $0x8] sm:$0xf]
    %v164 = vld [vmem:[#allocation8 + $0xc] sm:$0xf]
    %v165 = vld [vmem:[#allocation8 + $0x10] sm:$0xf]
    %v166 = vld [vmem:[#allocation8 + $0x14] sm:$0xf]
    %v167 = vld [vmem:[#allocation8 + $0x18] sm:$0xf]
    %v168 = vld [vmem:[#allocation8 + $0x1c] sm:$0xf]
    %v169 = vld [vmem:[#allocation8 + $0x20] sm:$0xf]
    %v170 = vld [vmem:[#allocation8 + $0x24] sm:$0xf]
    %v171 = vld [vmem:[#allocation8 + $0x28] sm:$0xf]
    %v172 = vld [vmem:[#allocation8 + $0x2c] sm:$0xf]
    %v173 = vld [vmem:[#allocation8 + $0x30] sm:$0xf]
    %v174 = vld [vmem:[#allocation8 + $0x34] sm:$0xf]
    %v175 = vld [vmem:[#allocation8 + $0x38] sm:$0xf]
    %v176 = vld [vmem:[#allocation8 + $0x3c] sm:$0xf]
    %v177 = vld [vmem:[%s4] sm:$0x1]
    %v179 = vlaneseq
    %v180 = vshrl.u32 %v179, 7
    %v181 = vsub.s32 0, %v180
    %v182 = vrot.slane %v177, %v181
    %v200 = vunpack.c.l.b16 %v161
    %v201 = vunpack.c.l.b16 %v162
    %v202 = vunpack.c.l.b16 %v163
    %v203 = vunpack.c.l.b16 %v164
    %v204 = vunpack.c.l.b16 %v165
    %v205 = vunpack.c.l.b16 %v166
    %v206 = vunpack.c.l.b16 %v167
    %v207 = vunpack.c.l.b16 %v168
    %v208 = vunpack.c.l.b16 %v169
    %v209 = vunpack.c.l.b16 %v170
    %v210 = vunpack.c.l.b16 %v171
    %v211 = vunpack.c.l.b16 %v172
    %v212 = vunpack.c.l.b16 %v173
    %v213 = vunpack.c.l.b16 %v174
    %v214 = vunpack.c.l.b16 %v175
    %v215 = vunpack.c.l.b16 %v176
    %v216 = vpack.c.b16 %v201, %v200
    %v217 = vpack.c.b16 %v203, %v202
    %v218 = vpack.c.b16 %v205, %v204
    %v219 = vpack.c.b16 %v207, %v206
    %v220 = vpack.c.b16 %v209, %v208
    %v221 = vpack.c.b16 %v211, %v210
    %v222 = vpack.c.b16 %v213, %v212
    %v223 = vpack.c.b16 %v215, %v214
    %232 = vmatprep.subr.bf16.mxu0 0
    %233 = vmatpush1.bf16.msra.mxu0 %v223
    %234 = vmatprep.subr.bf16.mxu0 0
    %235 = vmatpush1.bf16.msra.mxu0 %v222
    %236 = vmatprep.subr.bf16.mxu0 0
    %237 = vmatpush1.bf16.msra.mxu0 %v221
    %238 = vmatprep.subr.bf16.mxu0 0
    %239 = vmatpush1.bf16.msra.mxu0 %v220
    %240 = vmatprep.subr.bf16.mxu0 0
    %241 = vmatpush1.bf16.msra.mxu0 %v219
    %242 = vmatprep.subr.bf16.mxu0 0
    %243 = vmatpush1.bf16.msra.mxu0 %v218
    %244 = vmatprep.subr.bf16.mxu0 0
    %245 = vmatpush1.bf16.msra.mxu0 %v217
    %246 = vmatprep.subr.bf16.mxu0 0
    %247 = vmatpush1.bf16.msra.mxu0 %v216
    %248 = vmatprep.subr.bf16.mxu0 0
    %249 = vmatpush2.bf16.msra.mxu0 0
    %250 = vmatprep.subr.bf16.mxu0 0
    %251 = vmatpush2.bf16.msra.mxu0 0
    %252 = vmatprep.subr.bf16.mxu0 0
    %253 = vmatpush2.bf16.msra.mxu0 0
    %254 = vmatprep.subr.bf16.mxu0 0
    %255 = vmatpush2.bf16.msra.mxu0 0
    %256 = vmatprep.subr.bf16.mxu0 0
    %257 = vmatpush2.bf16.msra.mxu0 0
    %258 = vmatprep.subr.bf16.mxu0 0
    %259 = vmatpush2.bf16.msra.mxu0 0
    %260 = vmatprep.subr.bf16.mxu0 0
    %261 = vmatpush2.bf16.msra.mxu0 0
    %262 = vmatprep.subr.bf16.mxu0 0
    %263 = vmatpush2.bf16.msra.mxu0 0
    %264 = vmatprep.mubr.bf16.mxu0 0
    %265 = vmatmul.mubr.bf16.gmra.mxu0 %v160
    %v266 = vpop.f32.mrf.mxu0
    %v267 = vadd.f32 %v182, %v266
    %v268 = vpop.f32.mrf.mxu0
    %v269 = vpop.f32.mrf.mxu0
    %v270 = vpop.f32.mrf.mxu0
    %271 = vdwg.mxu0
    %v272 = vand.u32 2147483647, %v267
    %273 = vadd.xlane.f32.xlu0 %v272
    %v274 = vpop.xlane.xlu0 %273
    %v275 = vmax.f32 %v274, 1e-12
    %v276 = vrcp.pop %v275
    %v277 = vmul.f32 %v267, %v276
    %278 = vst [vmem:[#allocation10] sm:$0xff] %v277
    %s279 = scalar_lea.vmem [#allocation5], 32
    %v280 = vld [vmem:[%s279] sm:$0xf]
    %v281 = vld [vmem:[%s279 + $0x4] sm:$0xf]
    %v282 = vld [vmem:[%s279 + $0x8] sm:$0xf]
    %v283 = vld [vmem:[%s279 + $0xc] sm:$0xf]
    %v284 = vld [vmem:[%s279 + $0x10] sm:$0xf]
    %v285 = vld [vmem:[%s279 + $0x14] sm:$0xf]
    %v286 = vld [vmem:[%s279 + $0x18] sm:$0xf]
    %v287 = vld [vmem:[%s279 + $0x1c] sm:$0xf]
    %s288 = scalar_lea.vmem [#allocation7], 1
    %v289 = vld [vmem:[%s288] sm:$0x1]
    %v291 = vlaneseq
    %v292 = vshrl.u32 %v291, 7
    %v293 = vsub.s32 0, %v292
    %v294 = vrot.slane %v289, %v293
    %v304 = vunpack.c.l.b16 %v280
    %v305 = vunpack.c.l.b16 %v281
    %v306 = vunpack.c.l.b16 %v282
    %v307 = vunpack.c.l.b16 %v283
    %v308 = vunpack.c.l.b16 %v284
    %v309 = vunpack.c.l.b16 %v285
    %v310 = vunpack.c.l.b16 %v286
    %v311 = vunpack.c.l.b16 %v287
    %v312 = vpack.c.b16 %v305, %v304
    %v313 = vpack.c.b16 %v307, %v306
    %v314 = vpack.c.b16 %v309, %v308
    %v315 = vpack.c.b16 %v311, %v310
    %320 = vmatprep.subr.bf16.mxu0 0
    %321 = vmatpush1.bf16.msra.mxu0 0
    %322 = vmatprep.subr.bf16.mxu0 0
    %323 = vmatpush1.bf16.msra.mxu0 0
    %324 = vmatprep.subr.bf16.mxu0 0
    %325 = vmatpush1.bf16.msra.mxu0 0
    %326 = vmatprep.subr.bf16.mxu0 0
    %327 = vmatpush1.bf16.msra.mxu0 0
    %328 = vmatprep.subr.bf16.mxu0 0
    %329 = vmatpush1.bf16.msra.mxu0 %v315
    %330 = vmatprep.subr.bf16.mxu0 0
    %331 = vmatpush1.bf16.msra.mxu0 %v314
    %332 = vmatprep.subr.bf16.mxu0 0
    %333 = vmatpush1.bf16.msra.mxu0 %v313
    %334 = vmatprep.subr.bf16.mxu0 0
    %335 = vmatpush1.bf16.msra.mxu0 %v312
    %336 = vmatprep.subr.bf16.mxu0 0
    %337 = vmatpush2.bf16.msra.mxu0 0
    %338 = vmatprep.subr.bf16.mxu0 0
    %339 = vmatpush2.bf16.msra.mxu0 0
    %340 = vmatprep.subr.bf16.mxu0 0
    %341 = vmatpush2.bf16.msra.mxu0 0
    %342 = vmatprep.subr.bf16.mxu0 0
    %343 = vmatpush2.bf16.msra.mxu0 0
    %344 = vmatprep.subr.bf16.mxu0 0
    %345 = vmatpush2.bf16.msra.mxu0 0
    %346 = vmatprep.subr.bf16.mxu0 0
    %347 = vmatpush2.bf16.msra.mxu0 0
    %348 = vmatprep.subr.bf16.mxu0 0
    %349 = vmatpush2.bf16.msra.mxu0 0
    %350 = vmatprep.subr.bf16.mxu0 0
    %351 = vmatpush2.bf16.msra.mxu0 0
    %352 = vmatprep.mubr.bf16.mxu0 0
    %353 = vmatmul.mubr.bf16.gmra.mxu0 %v117
    %v354 = vpop.f32.mrf.mxu0
    %v355 = vadd.f32 %v294, %v354
    %v356 = vpop.f32.mrf.mxu0
    %v357 = vpop.f32.mrf.mxu0
    %v358 = vpop.f32.mrf.mxu0
    %359 = vdwg.mxu0
    %v360 = vmax.f32 %v355, 0.0
    %v361 = vpack.c.bf16 %v360, %v360
    %s362 = scalar_lea.vmem [#allocation8], 64
    %v363 = vld [vmem:[%s362] sm:$0xf]
    %v364 = vld [vmem:[%s362 + $0x4] sm:$0xf]
    %v365 = vld [vmem:[%s362 + $0x8] sm:$0xf]
    %v366 = vld [vmem:[%s362 + $0xc] sm:$0xf]
    %v367 = vld [vmem:[%s362 + $0x10] sm:$0xf]
    %v368 = vld [vmem:[%s362 + $0x14] sm:$0xf]
    %v369 = vld [vmem:[%s362 + $0x18] sm:$0xf]
    %v370 = vld [vmem:[%s362 + $0x1c] sm:$0xf]
    %v371 = vld [vmem:[%s362 + $0x20] sm:$0xf]
    %v372 = vld [vmem:[%s362 + $0x24] sm:$0xf]
    %v373 = vld [vmem:[%s362 + $0x28] sm:$0xf]
    %v374 = vld [vmem:[%s362 + $0x2c] sm:$0xf]
    %v375 = vld [vmem:[%s362 + $0x30] sm:$0xf]
    %v376 = vld [vmem:[%s362 + $0x34] sm:$0xf]
    %v377 = vld [vmem:[%s362 + $0x38] sm:$0xf]
    %v378 = vld [vmem:[%s362 + $0x3c] sm:$0xf]
    %s379 = scalar_lea.vmem %s4, 1
    %v380 = vld [vmem:[%s379] sm:$0x1]
    %v382 = vlaneseq
    %v383 = vshrl.u32 %v382, 7
    %v384 = vsub.s32 0, %v383
    %v385 = vrot.slane %v380, %v384
    %v403 = vunpack.c.l.b16 %v363
    %v404 = vunpack.c.l.b16 %v364
    %v405 = vunpack.c.l.b16 %v365
    %v406 = vunpack.c.l.b16 %v366
    %v407 = vunpack.c.l.b16 %v367
    %v408 = vunpack.c.l.b16 %v368
    %v409 = vunpack.c.l.b16 %v369
    %v410 = vunpack.c.l.b16 %v370
    %v411 = vunpack.c.l.b16 %v371
    %v412 = vunpack.c.l.b16 %v372
    %v413 = vunpack.c.l.b16 %v373
    %v414 = vunpack.c.l.b16 %v374
    %v415 = vunpack.c.l.b16 %v375
    %v416 = vunpack.c.l.b16 %v376
    %v417 = vunpack.c.l.b16 %v377
    %v418 = vunpack.c.l.b16 %v378
    %v419 = vpack.c.b16 %v404, %v403
    %v420 = vpack.c.b16 %v406, %v405
    %v421 = vpack.c.b16 %v408, %v407
    %v422 = vpack.c.b16 %v410, %v409
    %v423 = vpack.c.b16 %v412, %v411
    %v424 = vpack.c.b16 %v414, %v413
    %v425 = vpack.c.b16 %v416, %v415
    %v426 = vpack.c.b16 %v418, %v417
    %435 = vmatprep.subr.bf16.mxu0 0
    %436 = vmatpush1.bf16.msra.mxu0 %v426
    %437 = vmatprep.subr.bf16.mxu0 0
    %438 = vmatpush1.bf16.msra.mxu0 %v425
    %439 = vmatprep.subr.bf16.mxu0 0
    %440 = vmatpush1.bf16.msra.mxu0 %v424
    %441 = vmatprep.subr.bf16.mxu0 0
    %442 = vmatpush1.bf16.msra.mxu0 %v423
    %443 = vmatprep.subr.bf16.mxu0 0
    %444 = vmatpush1.bf16.msra.mxu0 %v422
    %445 = vmatprep.subr.bf16.mxu0 0
    %446 = vmatpush1.bf16.msra.mxu0 %v421
    %447 = vmatprep.subr.bf16.mxu0 0
    %448 = vmatpush1.bf16.msra.mxu0 %v420
    %449 = vmatprep.subr.bf16.mxu0 0
    %450 = vmatpush1.bf16.msra.mxu0 %v419
    %451 = vmatprep.subr.bf16.mxu0 0
    %452 = vmatpush2.bf16.msra.mxu0 0
    %453 = vmatprep.subr.bf16.mxu0 0
    %454 = vmatpush2.bf16.msra.mxu0 0
    %455 = vmatprep.subr.bf16.mxu0 0
    %456 = vmatpush2.bf16.msra.mxu0 0
    %457 = vmatprep.subr.bf16.mxu0 0
    %458 = vmatpush2.bf16.msra.mxu0 0
    %459 = vmatprep.subr.bf16.mxu0 0
    %460 = vmatpush2.bf16.msra.mxu0 0
    %461 = vmatprep.subr.bf16.mxu0 0
    %462 = vmatpush2.bf16.msra.mxu0 0
    %463 = vmatprep.subr.bf16.mxu0 0
    %464 = vmatpush2.bf16.msra.mxu0 0
    %465 = vmatprep.subr.bf16.mxu0 0
    %466 = vmatpush2.bf16.msra.mxu0 0
    %467 = vmatprep.mubr.bf16.mxu0 0
    %468 = vmatmul.mubr.bf16.gmra.mxu0 %v361
    %v469 = vpop.f32.mrf.mxu0
    %v470 = vadd.f32 %v385, %v469
    %v471 = vpop.f32.mrf.mxu0
    %v472 = vpop.f32.mrf.mxu0
    %v473 = vpop.f32.mrf.mxu0
    %474 = vdwg.mxu0
    %v475 = vand.u32 2147483647, %v470
    %476 = vadd.xlane.f32.xlu0 %v475
    %v477 = vpop.xlane.xlu0 %476
    %v478 = vmax.f32 %v477, 1e-12
    %v479 = vrcp.pop %v478
    %v480 = vmul.f32 %v470, %v479
    %s481 = scalar_lea.vmem [#allocation10], 8
    %482 = vst [vmem:[%s481] sm:$0xff] %v480
    %s483 = scalar_lea.vmem [#allocation5], 64
    %v484 = vld [vmem:[%s483] sm:$0xf]
    %v485 = vld [vmem:[%s483 + $0x4] sm:$0xf]
    %v486 = vld [vmem:[%s483 + $0x8] sm:$0xf]
    %v487 = vld [vmem:[%s483 + $0xc] sm:$0xf]
    %v488 = vld [vmem:[%s483 + $0x10] sm:$0xf]
    %v489 = vld [vmem:[%s483 + $0x14] sm:$0xf]
    %v490 = vld [vmem:[%s483 + $0x18] sm:$0xf]
    %v491 = vld [vmem:[%s483 + $0x1c] sm:$0xf]
    %s492 = scalar_lea.vmem [#allocation7], 2
    %v493 = vld [vmem:[%s492] sm:$0x1]
    %v495 = vlaneseq
    %v496 = vshrl.u32 %v495, 7
    %v497 = vsub.s32 0, %v496
    %v498 = vrot.slane %v493, %v497
    %v508 = vunpack.c.l.b16 %v484
    %v509 = vunpack.c.l.b16 %v485
    %v510 = vunpack.c.l.b16 %v486
    %v511 = vunpack.c.l.b16 %v487
    %v512 = vunpack.c.l.b16 %v488
    %v513 = vunpack.c.l.b16 %v489
    %v514 = vunpack.c.l.b16 %v490
    %v515 = vunpack.c.l.b16 %v491
    %v516 = vpack.c.b16 %v509, %v508
    %v517 = vpack.c.b16 %v511, %v510
    %v518 = vpack.c.b16 %v513, %v512
    %v519 = vpack.c.b16 %v515, %v514
    %524 = vmatprep.subr.bf16.mxu0 0
    %525 = vmatpush1.bf16.msra.mxu0 0
    %526 = vmatprep.subr.bf16.mxu0 0
    %527 = vmatpush1.bf16.msra.mxu0 0
    %528 = vmatprep.subr.bf16.mxu0 0
    %529 = vmatpush1.bf16.msra.mxu0 0
    %530 = vmatprep.subr.bf16.mxu0 0
    %531 = vmatpush1.bf16.msra.mxu0 0
    %532 = vmatprep.subr.bf16.mxu0 0
    %533 = vmatpush1.bf16.msra.mxu0 %v519
    %534 = vmatprep.subr.bf16.mxu0 0
    %535 = vmatpush1.bf16.msra.mxu0 %v518
    %536 = vmatprep.subr.bf16.mxu0 0
    %537 = vmatpush1.bf16.msra.mxu0 %v517
    %538 = vmatprep.subr.bf16.mxu0 0
    %539 = vmatpush1.bf16.msra.mxu0 %v516
    %540 = vmatprep.subr.bf16.mxu0 0
    %541 = vmatpush2.bf16.msra.mxu0 0
    %542 = vmatprep.subr.bf16.mxu0 0
    %543 = vmatpush2.bf16.msra.mxu0 0
    %544 = vmatprep.subr.bf16.mxu0 0
    %545 = vmatpush2.bf16.msra.mxu0 0
    %546 = vmatprep.subr.bf16.mxu0 0
    %547 = vmatpush2.bf16.msra.mxu0 0
    %548 = vmatprep.subr.bf16.mxu0 0
    %549 = vmatpush2.bf16.msra.mxu0 0
    %550 = vmatprep.subr.bf16.mxu0 0
    %551 = vmatpush2.bf16.msra.mxu0 0
    %552 = vmatprep.subr.bf16.mxu0 0
    %553 = vmatpush2.bf16.msra.mxu0 0
    %554 = vmatprep.subr.bf16.mxu0 0
    %555 = vmatpush2.bf16.msra.mxu0 0
    %556 = vmatprep.mubr.bf16.mxu0 0
    %557 = vmatmul.mubr.bf16.gmra.mxu0 %v117
    %v558 = vpop.f32.mrf.mxu0
    %v559 = vadd.f32 %v498, %v558
    %v560 = vpop.f32.mrf.mxu0
    %v561 = vpop.f32.mrf.mxu0
    %v562 = vpop.f32.mrf.mxu0
    %563 = vdwg.mxu0
    %v564 = vmax.f32 %v559, 0.0
    %v565 = vpack.c.bf16 %v564, %v564
    %s566 = scalar_lea.vmem [#allocation8], 128
    %v567 = vld [vmem:[%s566] sm:$0xf]
    %v568 = vld [vmem:[%s566 + $0x4] sm:$0xf]
    %v569 = vld [vmem:[%s566 + $0x8] sm:$0xf]
    %v570 = vld [vmem:[%s566 + $0xc] sm:$0xf]
    %v571 = vld [vmem:[%s566 + $0x10] sm:$0xf]
    %v572 = vld [vmem:[%s566 + $0x14] sm:$0xf]
    %v573 = vld [vmem:[%s566 + $0x18] sm:$0xf]
    %v574 = vld [vmem:[%s566 + $0x1c] sm:$0xf]
    %v575 = vld [vmem:[%s566 + $0x20] sm:$0xf]
    %v576 = vld [vmem:[%s566 + $0x24] sm:$0xf]
    %v577 = vld [vmem:[%s566 + $0x28] sm:$0xf]
    %v578 = vld [vmem:[%s566 + $0x2c] sm:$0xf]
    %v579 = vld [vmem:[%s566 + $0x30] sm:$0xf]
    %v580 = vld [vmem:[%s566 + $0x34] sm:$0xf]
    %v581 = vld [vmem:[%s566 + $0x38] sm:$0xf]
    %v582 = vld [vmem:[%s566 + $0x3c] sm:$0xf]
    %s583 = scalar_lea.vmem %s4, 2
    %v584 = vld [vmem:[%s583] sm:$0x1]
    %v586 = vlaneseq
    %v587 = vshrl.u32 %v586, 7
    %v588 = vsub.s32 0, %v587
    %v589 = vrot.slane %v584, %v588
    %v607 = vunpack.c.l.b16 %v567
    %v608 = vunpack.c.l.b16 %v568
    %v609 = vunpack.c.l.b16 %v569
    %v610 = vunpack.c.l.b16 %v570
    %v611 = vunpack.c.l.b16 %v571
    %v612 = vunpack.c.l.b16 %v572
    %v613 = vunpack.c.l.b16 %v573
    %v614 = vunpack.c.l.b16 %v574
    %v615 = vunpack.c.l.b16 %v575
    %v616 = vunpack.c.l.b16 %v576
    %v617 = vunpack.c.l.b16 %v577
    %v618 = vunpack.c.l.b16 %v578
    %v619 = vunpack.c.l.b16 %v579
    %v620 = vunpack.c.l.b16 %v580
    %v621 = vunpack.c.l.b16 %v581
    %v622 = vunpack.c.l.b16 %v582
    %v623 = vpack.c.b16 %v608, %v607
    %v624 = vpack.c.b16 %v610, %v609
    %v625 = vpack.c.b16 %v612, %v611
    %v626 = vpack.c.b16 %v614, %v613
    %v627 = vpack.c.b16 %v616, %v615
    %v628 = vpack.c.b16 %v618, %v617
    %v629 = vpack.c.b16 %v620, %v619
    %v630 = vpack.c.b16 %v622, %v621
    %639 = vmatprep.subr.bf16.mxu0 0
    %640 = vmatpush1.bf16.msra.mxu0 %v630
    %641 = vmatprep.subr.bf16.mxu0 0
    %642 = vmatpush1.bf16.msra.mxu0 %v629
    %643 = vmatprep.subr.bf16.mxu0 0
    %644 = vmatpush1.bf16.msra.mxu0 %v628
    %645 = vmatprep.subr.bf16.mxu0 0
    %646 = vmatpush1.bf16.msra.mxu0 %v627
    %647 = vmatprep.subr.bf16.mxu0 0
    %648 = vmatpush1.bf16.msra.mxu0 %v626
    %649 = vmatprep.subr.bf16.mxu0 0
    %650 = vmatpush1.bf16.msra.mxu0 %v625
    %651 = vmatprep.subr.bf16.mxu0 0
    %652 = vmatpush1.bf16.msra.mxu0 %v624
    %653 = vmatprep.subr.bf16.mxu0 0
    %654 = vmatpush1.bf16.msra.mxu0 %v623
    %655 = vmatprep.subr.bf16.mxu0 0
    %656 = vmatpush2.bf16.msra.mxu0 0
    %657 = vmatprep.subr.bf16.mxu0 0
    %658 = vmatpush2.bf16.msra.mxu0 0
    %659 = vmatprep.subr.bf16.mxu0 0
    %660 = vmatpush2.bf16.msra.mxu0 0
    %661 = vmatprep.subr.bf16.mxu0 0
    %662 = vmatpush2.bf16.msra.mxu0 0
    %663 = vmatprep.subr.bf16.mxu0 0
    %664 = vmatpush2.bf16.msra.mxu0 0
    %665 = vmatprep.subr.bf16.mxu0 0
    %666 = vmatpush2.bf16.msra.mxu0 0
    %667 = vmatprep.subr.bf16.mxu0 0
    %668 = vmatpush2.bf16.msra.mxu0 0
    %669 = vmatprep.subr.bf16.mxu0 0
    %670 = vmatpush2.bf16.msra.mxu0 0
    %671 = vmatprep.mubr.bf16.mxu0 0
    %672 = vmatmul.mubr.bf16.gmra.mxu0 %v565
    %v673 = vpop.f32.mrf.mxu0
    %v674 = vadd.f32 %v589, %v673
    %v675 = vpop.f32.mrf.mxu0
    %v676 = vpop.f32.mrf.mxu0
    %v677 = vpop.f32.mrf.mxu0
    %678 = vdwg.mxu0
    %v679 = vand.u32 2147483647, %v674
    %680 = vadd.xlane.f32.xlu0 %v679
    %v681 = vpop.xlane.xlu0 %680
    %v682 = vmax.f32 %v681, 1e-12
    %v683 = vrcp.pop %v682
    %v684 = vmul.f32 %v674, %v683
    %s685 = scalar_lea.vmem [#allocation10], 16
    %686 = vst [vmem:[%s685] sm:$0xff] %v684
    %s687 = scalar_lea.vmem [#allocation5], 96
    %v688 = vld [vmem:[%s687] sm:$0xf]
    %v689 = vld [vmem:[%s687 + $0x4] sm:$0xf]
    %v690 = vld [vmem:[%s687 + $0x8] sm:$0xf]
    %v691 = vld [vmem:[%s687 + $0xc] sm:$0xf]
    %v692 = vld [vmem:[%s687 + $0x10] sm:$0xf]
    %v693 = vld [vmem:[%s687 + $0x14] sm:$0xf]
    %v694 = vld [vmem:[%s687 + $0x18] sm:$0xf]
    %v695 = vld [vmem:[%s687 + $0x1c] sm:$0xf]
    %s696 = scalar_lea.vmem [#allocation7], 3
    %v697 = vld [vmem:[%s696] sm:$0x1]
    %v699 = vlaneseq
    %v700 = vshrl.u32 %v699, 7
    %v701 = vsub.s32 0, %v700
    %v702 = vrot.slane %v697, %v701
    %v712 = vunpack.c.l.b16 %v688
    %v713 = vunpack.c.l.b16 %v689
    %v714 = vunpack.c.l.b16 %v690
    %v715 = vunpack.c.l.b16 %v691
    %v716 = vunpack.c.l.b16 %v692
    %v717 = vunpack.c.l.b16 %v693
    %v718 = vunpack.c.l.b16 %v694
    %v719 = vunpack.c.l.b16 %v695
    %v720 = vpack.c.b16 %v713, %v712
    %v721 = vpack.c.b16 %v715, %v714
    %v722 = vpack.c.b16 %v717, %v716
    %v723 = vpack.c.b16 %v719, %v718
    %728 = vmatprep.subr.bf16.mxu0 0
    %729 = vmatpush1.bf16.msra.mxu0 0
    %730 = vmatprep.subr.bf16.mxu0 0
    %731 = vmatpush1.bf16.msra.mxu0 0
    %732 = vmatprep.subr.bf16.mxu0 0
    %733 = vmatpush1.bf16.msra.mxu0 0
    %734 = vmatprep.subr.bf16.mxu0 0
    %735 = vmatpush1.bf16.msra.mxu0 0
    %736 = vmatprep.subr.bf16.mxu0 0
    %737 = vmatpush1.bf16.msra.mxu0 %v723
    %738 = vmatprep.subr.bf16.mxu0 0
    %739 = vmatpush1.bf16.msra.mxu0 %v722
    %740 = vmatprep.subr.bf16.mxu0 0
    %741 = vmatpush1.bf16.msra.mxu0 %v721
    %742 = vmatprep.subr.bf16.mxu0 0
    %743 = vmatpush1.bf16.msra.mxu0 %v720
    %744 = vmatprep.subr.bf16.mxu0 0
    %745 = vmatpush2.bf16.msra.mxu0 0
    %746 = vmatprep.subr.bf16.mxu0 0
    %747 = vmatpush2.bf16.msra.mxu0 0
    %748 = vmatprep.subr.bf16.mxu0 0
    %749 = vmatpush2.bf16.msra.mxu0 0
    %750 = vmatprep.subr.bf16.mxu0 0
    %751 = vmatpush2.bf16.msra.mxu0 0
    %752 = vmatprep.subr.bf16.mxu0 0
    %753 = vmatpush2.bf16.msra.mxu0 0
    %754 = vmatprep.subr.bf16.mxu0 0
    %755 = vmatpush2.bf16.msra.mxu0 0
    %756 = vmatprep.subr.bf16.mxu0 0
    %757 = vmatpush2.bf16.msra.mxu0 0
    %758 = vmatprep.subr.bf16.mxu0 0
    %759 = vmatpush2.bf16.msra.mxu0 0
    %760 = vmatprep.mubr.bf16.mxu0 0
    %761 = vmatmul.mubr.bf16.gmra.mxu0 %v117
    %v762 = vpop.f32.mrf.mxu0
    %v763 = vadd.f32 %v702, %v762
    %v764 = vpop.f32.mrf.mxu0
    %v765 = vpop.f32.mrf.mxu0
    %v766 = vpop.f32.mrf.mxu0
    %767 = vdwg.mxu0
    %v768 = vmax.f32 %v763, 0.0
    %v769 = vpack.c.bf16 %v768, %v768
    %s770 = scalar_lea.vmem [#allocation8], 192
    %v771 = vld [vmem:[%s770] sm:$0xf]
    %v772 = vld [vmem:[%s770 + $0x4] sm:$0xf]
    %v773 = vld [vmem:[%s770 + $0x8] sm:$0xf]
    %v774 = vld [vmem:[%s770 + $0xc] sm:$0xf]
    %v775 = vld [vmem:[%s770 + $0x10] sm:$0xf]
    %v776 = vld [vmem:[%s770 + $0x14] sm:$0xf]
    %v777 = vld [vmem:[%s770 + $0x18] sm:$0xf]
    %v778 = vld [vmem:[%s770 + $0x1c] sm:$0xf]
    %v779 = vld [vmem:[%s770 + $0x20] sm:$0xf]
    %v780 = vld [vmem:[%s770 + $0x24] sm:$0xf]
    %v781 = vld [vmem:[%s770 + $0x28] sm:$0xf]
    %v782 = vld [vmem:[%s770 + $0x2c] sm:$0xf]
    %v783 = vld [vmem:[%s770 + $0x30] sm:$0xf]
    %v784 = vld [vmem:[%s770 + $0x34] sm:$0xf]
    %v785 = vld [vmem:[%s770 + $0x38] sm:$0xf]
    %v786 = vld [vmem:[%s770 + $0x3c] sm:$0xf]
    %s787 = scalar_lea.vmem %s4, 3
    %v788 = vld [vmem:[%s787] sm:$0x1]
    %v790 = vlaneseq
    %v791 = vshrl.u32 %v790, 7
    %v792 = vsub.s32 0, %v791
    %v793 = vrot.slane %v788, %v792
    %v811 = vunpack.c.l.b16 %v771
    %v812 = vunpack.c.l.b16 %v772
    %v813 = vunpack.c.l.b16 %v773
    %v814 = vunpack.c.l.b16 %v774
    %v815 = vunpack.c.l.b16 %v775
    %v816 = vunpack.c.l.b16 %v776
    %v817 = vunpack.c.l.b16 %v777
    %v818 = vunpack.c.l.b16 %v778
    %v819 = vunpack.c.l.b16 %v779
    %v820 = vunpack.c.l.b16 %v780
    %v821 = vunpack.c.l.b16 %v781
    %v822 = vunpack.c.l.b16 %v782
    %v823 = vunpack.c.l.b16 %v783
    %v824 = vunpack.c.l.b16 %v784
    %v825 = vunpack.c.l.b16 %v785
    %v826 = vunpack.c.l.b16 %v786
    %v827 = vpack.c.b16 %v812, %v811
    %v828 = vpack.c.b16 %v814, %v813
    %v829 = vpack.c.b16 %v816, %v815
    %v830 = vpack.c.b16 %v818, %v817
    %v831 = vpack.c.b16 %v820, %v819
    %v832 = vpack.c.b16 %v822, %v821
    %v833 = vpack.c.b16 %v824, %v823
    %v834 = vpack.c.b16 %v826, %v825
    %843 = vmatprep.subr.bf16.mxu0 0
    %844 = vmatpush1.bf16.msra.mxu0 %v834
    %845 = vmatprep.subr.bf16.mxu0 0
    %846 = vmatpush1.bf16.msra.mxu0 %v833
    %847 = vmatprep.subr.bf16.mxu0 0
    %848 = vmatpush1.bf16.msra.mxu0 %v832
    %849 = vmatprep.subr.bf16.mxu0 0
    %850 = vmatpush1.bf16.msra.mxu0 %v831
    %851 = vmatprep.subr.bf16.mxu0 0
    %852 = vmatpush1.bf16.msra.mxu0 %v830
    %853 = vmatprep.subr.bf16.mxu0 0
    %854 = vmatpush1.bf16.msra.mxu0 %v829
    %855 = vmatprep.subr.bf16.mxu0 0
    %856 = vmatpush1.bf16.msra.mxu0 %v828
    %857 = vmatprep.subr.bf16.mxu0 0
    %858 = vmatpush1.bf16.msra.mxu0 %v827
    %859 = vmatprep.subr.bf16.mxu0 0
    %860 = vmatpush2.bf16.msra.mxu0 0
    %861 = vmatprep.subr.bf16.mxu0 0
    %862 = vmatpush2.bf16.msra.mxu0 0
    %863 = vmatprep.subr.bf16.mxu0 0
    %864 = vmatpush2.bf16.msra.mxu0 0
    %865 = vmatprep.subr.bf16.mxu0 0
    %866 = vmatpush2.bf16.msra.mxu0 0
    %867 = vmatprep.subr.bf16.mxu0 0
    %868 = vmatpush2.bf16.msra.mxu0 0
    %869 = vmatprep.subr.bf16.mxu0 0
    %870 = vmatpush2.bf16.msra.mxu0 0
    %871 = vmatprep.subr.bf16.mxu0 0
    %872 = vmatpush2.bf16.msra.mxu0 0
    %873 = vmatprep.subr.bf16.mxu0 0
    %874 = vmatpush2.bf16.msra.mxu0 0
    %875 = vmatprep.mubr.bf16.mxu0 0
    %876 = vmatmul.mubr.bf16.gmra.mxu0 %v769
    %v877 = vpop.f32.mrf.mxu0
    %v878 = vadd.f32 %v793, %v877
    %v879 = vpop.f32.mrf.mxu0
    %v880 = vpop.f32.mrf.mxu0
    %v881 = vpop.f32.mrf.mxu0
    %882 = vdwg.mxu0
    %v883 = vand.u32 2147483647, %v878
    %884 = vadd.xlane.f32.xlu0 %v883
    %v885 = vpop.xlane.xlu0 %884
    %v886 = vmax.f32 %v885, 1e-12
    %v887 = vrcp.pop %v886
    %v888 = vmul.f32 %v878, %v887
    %s889 = scalar_lea.vmem [#allocation10], 24
    %890 = vst [vmem:[%s889] sm:$0xff] %v888
    // Predicated region
    $region38: #{tpu_custom_call.1} parent=1 // pred_check
      _
    $region39: #{tpu_custom_call.1} parent=1 // pred_check_branch
      %892 = sbr.rel (0) target = $region41
    $region40: #{tpu_custom_call.1} parent=1 // pred_region
      %s894 = ssub.s32 512, 512
      %895 = vsyncadd [#allocation4], %s894
      %s896 = sshll.u32 [#allocation10], 4
      %s897 = int_to_ptr.vmem [resolvable:$true] %s896
      %902 = dma.vmem_to_hbm [thread:$0]  %s897, 512, %s5, [#allocation4], 128, 128, 8
    $region41: #{tpu_custom_call.1} parent=1 // pred_fallthru
      _
    // Predicated region
    $region42: #{tpu_custom_call.1} parent=1 // pred_check
      _
    $region43: #{tpu_custom_call.1} parent=1 // pred_check_branch
      %904 = sbr.rel (0) target = $region45
    $region44: #{tpu_custom_call.1} parent=1 // pred_region
      %905 = dma.done [#allocation4], 512
    $region45: #{tpu_custom_call.1} parent=1 // pred_fallthru
      _
    %906 = vsyncpa [#allocation3], 1
    %907 = vsyncpa [#allocation6], 1
    %908 = vsyncpa [#allocation9], 1
    %909 = vsyncpa [#allocation4], 1

</llo_original>
